<compile_context>
chip_gen: v7x
topology: tpu7x:2x2x1
jax: 0.10.0
libtpu: 0.0.40
codegen_flags: <defaults>
</compile_context>

<pallas_src>
import math
from functools import partial

import jax
import jax.numpy as jnp
import numpy as np
from jax.experimental import pallas as pl
from jax.experimental.pallas import tpu as pltpu

LANE = 128     # vreg lane width: feature dims padded to this for lane-dense stores
SUBLANE = 8    # vreg sublane width: reduced row counts rounded to this


def _round_up(n, m):
    return ((n + m - 1) // m) * m


def modbert_kernel(x_ref, wqkv_ref, bqkv_ref, kmask_ref, wl_ref, bl_ref, out_ref,
                   *, d_valid, d_red, d_pad):
    """Fused BertAttention + Linear + Softmax for one (S, D) problem.

    x_ref    : (S, Dp)     bf16, zero-padded input
    wqkv_ref : (Dp, 3*Dp)  bf16, pre-transposed fused [Wq | Wk | Wv]
    bqkv_ref : (1, 3*Dp)   f32
    kmask_ref: (1, Dp)     f32 additive key-lane mask (0 valid / -1e30 padded)
    wl_ref   : (Dp, Op)    bf16, pre-transposed output projection
    bl_ref   : (1, Op)     f32, padded lanes hold -1e30 -> final softmax zeroes them
    out_ref  : (S, Op)     f32
    """
    mxu = wqkv_ref.dtype                       # bf16 by default (MXU-native)
    x = x_ref[...]                             # (S, Dp) bf16

    # Single fused QKV projection on the MXU (bf16 operands, f32 accumulation).
    qkv = jnp.dot(x, wqkv_ref[...], preferred_element_type=jnp.float32) + bqkv_ref[...]
    q = qkv[:, 0 * d_pad:1 * d_pad]                       # (S, Dp) f32
    k = qkv[:, 1 * d_pad:2 * d_pad]                       # (S, Dp) f32
    v_act = qkv[:, 2 * d_pad:2 * d_pad + d_red]           # (S, d_red) f32 — only live attn rows

    # scores = Q^T K / sqrt(D) + key-lane mask   (f32: contraction depth is only S).
    scores = jax.lax.dot_general(
        q, k, dimension_numbers=(((0,), (0,)), ((), ())),
        preferred_element_type=jnp.float32)
    scores = scores * (1.0 / math.sqrt(d_valid)) + kmask_ref[...]     # (Dp, Dp)

    # Softmax only over the d_red valid query-feature rows (dead rows never materialized).
    s_act = scores[:d_red, :]
    s_act = s_act - jnp.max(s_act, axis=-1, keepdims=True)
    p = jnp.exp(s_act)
    attn = p * pl.reciprocal(jnp.sum(p, axis=-1, keepdims=True), approx=True)  # (d_red, Dp)

    # res = V @ attention_weights  (dead attn rows excluded rather than zeroed -> no 0*inf).
    res = jnp.dot(v_act.astype(mxu), attn.astype(mxu),
                  preferred_element_type=jnp.float32)                 # (S, Dp)

    # Output projection + softmax (padded output lanes carry a -1e30 bias -> ~0 probability).
    lin = jnp.dot(res.astype(mxu), wl_ref[...],
                  preferred_element_type=jnp.float32) + bl_ref[...]   # (S, Op)
    lin = lin - jnp.max(lin, axis=-1, keepdims=True)
    e = jnp.exp(lin)
    out_ref[...] = (e * pl.reciprocal(jnp.sum(e, axis=-1, keepdims=True),
                                      approx=True)).astype(out_ref.dtype)


def prepare_params(params, mxu_dtype=jnp.bfloat16):
    """One-time weight preparation (hoisted out of the forward path).

    Pre-transposes to (in, out), pads feature dims to lane multiples, fuses Q/K/V into one
    weight, builds the additive key-lane mask and the -1e30-padded output bias, and casts
    matmul weights to the MXU dtype.
    """
    D = params["wq"].shape[1]
    O = params["wl"].shape[0]
    Dp = _round_up(D, LANE)
    Op = _round_up(O, LANE)
    f32 = jnp.float32

    def pad2(w_t, rows, cols):
        return jnp.pad(w_t.astype(f32), ((0, rows - w_t.shape[0]), (0, cols - w_t.shape[1])))

    def pad1(b, n, fill=0.0):
        return jnp.concatenate([b.astype(f32), jnp.full((n - b.shape[0],), fill, f32)])

    w_qkv = jnp.concatenate([pad2(params["wq"].T, Dp, Dp),
                             pad2(params["wk"].T, Dp, Dp),
                             pad2(params["wv"].T, Dp, Dp)], axis=1).astype(mxu_dtype)
    b_qkv = jnp.concatenate([pad1(params["bq"], Dp),
                             pad1(params["bk"], Dp),
                             pad1(params["bv"], Dp)]).reshape(1, 3 * Dp)
    wl_t = pad2(params["wl"].T, Dp, Op).astype(mxu_dtype)
    b_l = pad1(params["bl"], Op, fill=-1e30).reshape(1, Op)
    key_mask = jnp.where(jnp.arange(Dp) < D, 0.0, -1e30).astype(f32).reshape(1, Dp)

    return {"w_qkv": w_qkv, "b_qkv": b_qkv, "wl_t": wl_t, "b_l": b_l,
            "key_mask": key_mask, "in_features": D, "out_features": O}


@partial(jax.jit, static_argnames=("out_valid",))
def _forward(x, w_qkv, b_qkv, key_mask, wl_t, b_l, *, out_valid):
    squeeze = x.ndim == 2
    if squeeze:
        x = x[None]
    B, S, D = x.shape
    Dp = w_qkv.shape[0]
    Op = wl_t.shape[1]
    d_red = _round_up(D, SUBLANE)

    # Only per-call data prep left in the forward path: pad x (tiny) and cast to MXU dtype.
    x_p = jnp.pad(x, ((0, 0), (0, 0), (0, Dp - D))).astype(w_qkv.dtype)

    flops = B * (2 * S * Dp * 3 * Dp        # fused QKV
                 + 2 * Dp * Dp * S          # Q^T K
                 + 2 * S * d_red * Dp       # V @ attn
                 + 2 * S * Dp * Op)         # output projection
    transcendentals = B * (d_red * Dp + S * Op)
    bytes_accessed = (x_p.size * x_p.dtype.itemsize
                      + w_qkv.size * w_qkv.dtype.itemsize
                      + wl_t.size * wl_t.dtype.itemsize
                      + 4 * (b_qkv.size + key_mask.size + b_l.size + B * S * Op))

    kernel = partial(modbert_kernel, d_valid=D, d_red=d_red, d_pad=Dp)

    out = pl.pallas_call(
        kernel,
        out_shape=jax.ShapeDtypeStruct((B, S, Op), jnp.float32),
        grid=(B,),
        in_specs=[
            pl.BlockSpec((None, S, Dp), lambda b: (b, 0, 0)),   # x: one batch element/step
            pl.BlockSpec((Dp, 3 * Dp), lambda b: (0, 0)),       # fused QKV weight (resident)
            pl.BlockSpec((1, 3 * Dp), lambda b: (0, 0)),        # fused QKV bias
            pl.BlockSpec((1, Dp), lambda b: (0, 0)),            # additive key-lane mask
            pl.BlockSpec((Dp, Op), lambda b: (0, 0)),           # output projection weight
            pl.BlockSpec((1, Op), lambda b: (0, 0)),            # output bias (-1e30 pads)
        ],
        out_specs=pl.BlockSpec((None, S, Op), lambda b: (b, 0, 0)),
        compiler_params=pltpu.CompilerParams(
            dimension_semantics=("parallel",)),                 # batch axis -> 2 TCs on v7x
        cost_estimate=pl.CostEstimate(flops=flops,
                                      transcendentals=transcendentals,
                                      bytes_accessed=bytes_accessed),
    )(x_p, w_qkv, b_qkv, key_mask, wl_t, b_l)

    out = out[..., :out_valid]
    if squeeze:
        out = out[0]
    return out


def modbert_attention(x, prep):
    """Forward pass. x: (S, D) or (B, S, D); prep: output of prepare_params()."""
    return _forward(x, prep["w_qkv"], prep["b_qkv"], prep["key_mask"],
                    prep["wl_t"], prep["b_l"], out_valid=prep["out_features"])


def init_params(key, input_features, out_features):
    """Deterministic init mirroring the module's reset_parameters (U[-1/sqrt(in), 1/sqrt(in)])."""
    keys = jax.random.split(key, 8)
    stdv = 1.0 / math.sqrt(input_features)

    def u(k, shape):
        return jax.random.uniform(k, shape, jnp.float32, -stdv, stdv)

    return {
        "wq": u(keys[0], (input_features, input_features)),
        "bq": u(keys[1], (input_features,)),
        "wk": u(keys[2], (input_features, input_features)),
        "bk": u(keys[3], (input_features,)),
        "wv": u(keys[4], (input_features, input_features)),
        "bv": u(keys[5], (input_features,)),
        "wl": u(keys[6], (out_features, input_features)),
        "bl": u(keys[7], (out_features,)),
    }


def modbert_reference(x, params):
    """Pure-JAX f32 reference of the PyTorch forward pass (for verification)."""
    D = x.shape[1]
    q = x @ params["wq"].T + params["bq"]
    k = x @ params["wk"].T + params["bk"]
    v = x @ params["wv"].T + params["bv"]
    scores = (q.T @ k) / math.sqrt(D)
    attn = jax.nn.softmax(scores, axis=-1)
    res = v @ attn
    lin = res @ params["wl"].T + params["bl"]
    return jax.nn.softmax(lin, axis=-1)


if __name__ == "__main__":
    S, D, O = 8, 32, 16          # seq_len, input_features, out_features
    key = jax.random.PRNGKey(0)
    kx, kp, kb = jax.random.split(key, 3)

    x = jax.random.normal(kx, (S, D), dtype=jnp.float32)
    params = init_params(kp, D, O)
    prep = prepare_params(params)            # one-time; hoisted out of the forward path

    # Unbatched (matches the PyTorch module exactly).
    out = jax.block_until_ready(modbert_attention(x, prep))
    ref = modbert_reference(x, params)
    assert out.shape == (S, O)
    err = float(np.max(np.abs(np.asarray(out) - np.asarray(ref))))
    # Tolerance accounts for bf16 MXU operands + approximate EUP reciprocals.
    assert np.allclose(np.asarray(out), np.asarray(ref), rtol=2e-2, atol=1e-2), err

    # Batched path: exercises the "parallel" batch grid axis (sharded across TCs on v7x).
    B = 4
    xb = jax.random.normal(kb, (B, S, D), dtype=jnp.float32)
    outb = jax.block_until_ready(modbert_attention(xb, prep))
    refb = jax.vmap(lambda xi: modbert_reference(xi, params))(xb)
    assert outb.shape == (B, S, O)
    errb = float(np.max(np.abs(np.asarray(outb) - np.asarray(refb))))
    assert np.allclose(np.asarray(outb), np.asarray(refb), rtol=2e-2, atol=1e-2), errb

    print("KERNEL_OK")
</pallas_src>

<mosaic_0001>
module attributes {stable_mosaic.version = 11 : i64} {
  func.func @modbert_kernel(%arg0: i32, %arg1: memref<1x8x128xbf16, #tpu.memory_space<vmem>>, %arg2: memref<128x384xbf16, #tpu.memory_space<vmem>>, %arg3: memref<1x384xf32, #tpu.memory_space<vmem>>, %arg4: memref<1x128xf32, #tpu.memory_space<vmem>>, %arg5: memref<128x128xbf16, #tpu.memory_space<vmem>>, %arg6: memref<1x128xf32, #tpu.memory_space<vmem>>, %arg7: memref<1x8x128xf32, #tpu.memory_space<vmem>>) attributes {dimension_semantics = [#tpu.dimension_semantics<parallel>], iteration_bounds = array<i64: 1>, scalar_prefetch = 0 : i64, scratch_operands = 0 : i64, tpu.core_type = #tpu.core_type<tc>, window_params = [{transform_indices = @transform_0, window_bounds = array<i64: 1, 8, 128>}, {pipeline_mode = #tpu.pipeline_mode<synchronous>, transform_indices = @transform_1, window_bounds = array<i64: 128, 384>}, {pipeline_mode = #tpu.pipeline_mode<synchronous>, transform_indices = @transform_2, window_bounds = array<i64: 1, 384>}, {pipeline_mode = #tpu.pipeline_mode<synchronous>, transform_indices = @transform_3, window_bounds = array<i64: 1, 128>}, {pipeline_mode = #tpu.pipeline_mode<synchronous>, transform_indices = @transform_4, window_bounds = array<i64: 128, 128>}, {pipeline_mode = #tpu.pipeline_mode<synchronous>, transform_indices = @transform_5, window_bounds = array<i64: 1, 128>}, {transform_indices = @transform_6, window_bounds = array<i64: 1, 8, 128>}]} {
    %c0 = arith.constant 0 : index
    %c0_0 = arith.constant 0 : index
    %c0_1 = arith.constant 0 : index
    %0 = vector.load %arg1[%c0, %c0_0, %c0_1] : memref<1x8x128xbf16, #tpu.memory_space<vmem>>, vector<1x8x128xbf16>
    %1 = vector.shape_cast %0 : vector<1x8x128xbf16> to vector<8x128xbf16>
    %c0_2 = arith.constant 0 : index
    %c0_3 = arith.constant 0 : index
    %2 = vector.load %arg2[%c0_2, %c0_3] : memref<128x384xbf16, #tpu.memory_space<vmem>>, vector<128x384xbf16>
    %cst = arith.constant dense<0.000000e+00> : vector<8x384xf32>
    %3 = tpu.matmul %1, %2, %cst {dimension_numbers = #tpu.dot_dimension_numbers<[1], [0], [0], [1], [0, 0, 1, 1], [], []>} : vector<8x128xbf16>, vector<128x384xbf16>, vector<8x384xf32> -> vector<8x384xf32>
    %c0_4 = arith.constant 0 : index
    %c0_5 = arith.constant 0 : index
    %4 = vector.load %arg3[%c0_4, %c0_5] : memref<1x384xf32, #tpu.memory_space<vmem>>, vector<1x384xf32>
    %5 = vector.broadcast %4 : vector<1x384xf32> to vector<8x384xf32>
    %6 = arith.addf %3, %5 : vector<8x384xf32>
    %7 = vector.extract_strided_slice %6 {offsets = [0, 0], sizes = [8, 128], strides = [1, 1]} : vector<8x384xf32> to vector<8x128xf32>
    %8 = vector.extract_strided_slice %6 {offsets = [0, 128], sizes = [8, 128], strides = [1, 1]} : vector<8x384xf32> to vector<8x128xf32>
    %9 = vector.extract_strided_slice %6 {offsets = [0, 256], sizes = [8, 32], strides = [1, 1]} : vector<8x384xf32> to vector<8x32xf32>
    %cst_6 = arith.constant dense<0.000000e+00> : vector<128x128xf32>
    %10 = tpu.matmul %7, %8, %cst_6 {dimension_numbers = #tpu.dot_dimension_numbers<[0], [0], [1], [1], [0, 1, 1, 1], [], []>} : vector<8x128xf32>, vector<8x128xf32>, vector<128x128xf32> -> vector<128x128xf32>
    %cst_7 = arith.constant 0.176776692 : f32
    %11 = vector.broadcast %cst_7 : f32 to vector<128x128xf32>
    %12 = arith.mulf %10, %11 : vector<128x128xf32>
    %c0_8 = arith.constant 0 : index
    %c0_9 = arith.constant 0 : index
    %13 = vector.load %arg4[%c0_8, %c0_9] : memref<1x128xf32, #tpu.memory_space<vmem>>, vector<1x128xf32>
    %14 = vector.broadcast %13 : vector<1x128xf32> to vector<128x128xf32>
    %15 = arith.addf %12, %14 : vector<128x128xf32>
    %16 = vector.extract_strided_slice %15 {offsets = [0, 0], sizes = [32, 128], strides = [1, 1]} : vector<128x128xf32> to vector<32x128xf32>
    %cst_10 = arith.constant dense<0xFF800000> : vector<32xf32>
    %17 = vector.multi_reduction <maximumf>, %16, %cst_10 [1] : vector<32x128xf32> to vector<32xf32>
    %18 = vector.shape_cast %17 : vector<32xf32> to vector<32x1xf32>
    %19 = vector.broadcast %18 : vector<32x1xf32> to vector<32x128xf32>
    %20 = arith.subf %16, %19 : vector<32x128xf32>
    %21 = math.exp %20 : vector<32x128xf32>
    %cst_11 = arith.constant dense<0.000000e+00> : vector<32xf32>
    %22 = vector.multi_reduction <add>, %21, %cst_11 [1] : vector<32x128xf32> to vector<32xf32>
    %23 = vector.shape_cast %22 : vector<32xf32> to vector<32x1xf32>
    %24 = tpu.reciprocal %23 {approx = true} : vector<32x1xf32> -> vector<32x1xf32>
    %25 = vector.broadcast %24 : vector<32x1xf32> to vector<32x128xf32>
    %26 = arith.mulf %21, %25 : vector<32x128xf32>
    %27 = arith.truncf %9 : vector<8x32xf32> to vector<8x32xbf16>
    %28 = arith.truncf %26 : vector<32x128xf32> to vector<32x128xbf16>
    %cst_12 = arith.constant dense<0.000000e+00> : vector<8x128xf32>
    %29 = tpu.matmul %27, %28, %cst_12 {dimension_numbers = #tpu.dot_dimension_numbers<[1], [0], [0], [1], [0, 0, 1, 1], [], []>} : vector<8x32xbf16>, vector<32x128xbf16>, vector<8x128xf32> -> vector<8x128xf32>
    %30 = arith.truncf %29 : vector<8x128xf32> to vector<8x128xbf16>
    %c0_13 = arith.constant 0 : index
    %c0_14 = arith.constant 0 : index
    %31 = vector.load %arg5[%c0_13, %c0_14] : memref<128x128xbf16, #tpu.memory_space<vmem>>, vector<128x128xbf16>
    %cst_15 = arith.constant dense<0.000000e+00> : vector<8x128xf32>
    %32 = tpu.matmul %30, %31, %cst_15 {dimension_numbers = #tpu.dot_dimension_numbers<[1], [0], [0], [1], [0, 0, 1, 1], [], []>} : vector<8x128xbf16>, vector<128x128xbf16>, vector<8x128xf32> -> vector<8x128xf32>
    %c0_16 = arith.constant 0 : index
    %c0_17 = arith.constant 0 : index
    %33 = vector.load %arg6[%c0_16, %c0_17] : memref<1x128xf32, #tpu.memory_space<vmem>>, vector<1x128xf32>
    %34 = vector.broadcast %33 : vector<1x128xf32> to vector<8x128xf32>
    %35 = arith.addf %32, %34 : vector<8x128xf32>
    %cst_18 = arith.constant dense<0xFF800000> : vector<8xf32>
    %36 = vector.multi_reduction <maximumf>, %35, %cst_18 [1] : vector<8x128xf32> to vector<8xf32>
    %37 = vector.shape_cast %36 : vector<8xf32> to vector<8x1xf32>
    %38 = vector.broadcast %37 : vector<8x1xf32> to vector<8x128xf32>
    %39 = arith.subf %35, %38 : vector<8x128xf32>
    %40 = math.exp %39 : vector<8x128xf32>
    %cst_19 = arith.constant dense<0.000000e+00> : vector<8xf32>
    %41 = vector.multi_reduction <add>, %40, %cst_19 [1] : vector<8x128xf32> to vector<8xf32>
    %42 = vector.shape_cast %41 : vector<8xf32> to vector<8x1xf32>
    %43 = tpu.reciprocal %42 {approx = true} : vector<8x1xf32> -> vector<8x1xf32>
    %44 = vector.broadcast %43 : vector<8x1xf32> to vector<8x128xf32>
    %45 = arith.mulf %40, %44 : vector<8x128xf32>
    %c0_20 = arith.constant 0 : index
    %c0_21 = arith.constant 0 : index
    %c0_22 = arith.constant 0 : index
    %46 = vector.load %arg7[%c0_20, %c0_21, %c0_22] : memref<1x8x128xf32, #tpu.memory_space<vmem>>, vector<1x8x128xf32>
    %47 = vector.shape_cast %46 : vector<1x8x128xf32> to vector<8x128xf32>
    %48 = vector.shape_cast %45 : vector<8x128xf32> to vector<1x8x128xf32>
    tpu.vector_store %arg7[%c0_20, %c0_21, %c0_22], %48 {strides = array<i32>} : memref<1x8x128xf32, #tpu.memory_space<vmem>>, vector<1x8x128xf32>,
    return
  }
  func.func @transform_0(%arg0: i32) -> (i32, i32, i32) {
    %c0_i32 = arith.constant 0 : i32
    %c0_i32_0 = arith.constant 0 : i32
    %c0_i32_1 = arith.constant 0 : i32
    return %arg0, %c0_i32, %c0_i32_0 : i32, i32, i32
  }
  func.func @transform_1(%arg0: i32) -> (i32, i32) {
    %c0_i32 = arith.constant 0 : i32
    %c0_i32_0 = arith.constant 0 : i32
    %c0_i32_1 = arith.constant 0 : i32
    return %c0_i32, %c0_i32_0 : i32, i32
  }
  func.func @transform_2(%arg0: i32) -> (i32, i32) {
    %c0_i32 = arith.constant 0 : i32
    %c0_i32_0 = arith.constant 0 : i32
    %c0_i32_1 = arith.constant 0 : i32
    return %c0_i32, %c0_i32_0 : i32, i32
  }
  func.func @transform_3(%arg0: i32) -> (i32, i32) {
    %c0_i32 = arith.constant 0 : i32
    %c0_i32_0 = arith.constant 0 : i32
    %c0_i32_1 = arith.constant 0 : i32
    return %c0_i32, %c0_i32_0 : i32, i32
  }
  func.func @transform_4(%arg0: i32) -> (i32, i32) {
    %c0_i32 = arith.constant 0 : i32
    %c0_i32_0 = arith.constant 0 : i32
    %c0_i32_1 = arith.constant 0 : i32
    return %c0_i32, %c0_i32_0 : i32, i32
  }
  func.func @transform_5(%arg0: i32) -> (i32, i32) {
    %c0_i32 = arith.constant 0 : i32
    %c0_i32_0 = arith.constant 0 : i32
    %c0_i32_1 = arith.constant 0 : i32
    return %c0_i32, %c0_i32_0 : i32, i32
  }
  func.func @transform_6(%arg0: i32) -> (i32, i32, i32) {
    %c0_i32 = arith.constant 0 : i32
    %c0_i32_0 = arith.constant 0 : i32
    %c0_i32_1 = arith.constant 0 : i32
    return %arg0, %c0_i32, %c0_i32_0 : i32, i32, i32
  }
}

</mosaic_0001>

<llo_original>
// kernel: _forward.1
$region0: #{_forward.1}
  #allocation0 [shape = 'u32[]', space=smem, size = 0x4, offset = 0x4, fixed_abs, tag = 'smem constant byte address 0x4 - core index']
  #allocation1 [shape = 'u32[144,128]{1,0:T(1,128)}', space=vmem, size = 0x12000, scoped, tag = 'internal scratch']
  %s0 = inlined_call_operand.vmem [shape: bf16[1,8,128], index: 0, kind: input, shape index: {}]
  %s1 = inlined_call_operand.hbm [shape: bf16[128,384], index: 1, kind: input, shape index: {}]
  %s2 = inlined_call_operand.vmem [shape: f32[1,384], index: 2, kind: input, shape index: {}]
  %s3 = inlined_call_operand.vmem [shape: f32[1,128], index: 3, kind: input, shape index: {}]
  %s4 = inlined_call_operand.hbm [shape: bf16[128,128], index: 4, kind: input, shape index: {}]
  %s5 = inlined_call_operand.vmem [shape: f32[1,128], index: 5, kind: input, shape index: {}]
  %s6 = inlined_call_operand.vmem [shape: f32[1,8,128], index: 6, kind: output, shape index: {}]
  %s7 = sld [smem:[#allocation0]]
  $region42: #{_forward.1} parent=0
    _
  %s9 = ssub.s32 1, %s7
  %s10 = scalar_select 0, %s9, %s7
  $region1: #{_forward.1} parent=0
    #allocation2 [shape = 'u8[98304]{0}', space=vmem, size = 0x18000, scoped, tag = 'input window, operand 1, single buffered']
    #allocation3 [shape = 's32[1]{0}', space=sflag, size = 0x4, scoped, tag = 'scoped memory for _forward.1']
    #allocation4 [shape = 'u8[32768]{0}', space=vmem, size = 0x8000, scoped, tag = 'input window, operand 4, single buffered']
    #allocation5 [shape = 's32[1]{0}', space=sflag, size = 0x4, scoped, tag = 'scoped memory for _forward.1']
    %11 = vsyncpa [#allocation3], 0
    %12 = vsyncpa [#allocation5], 0
    // Predicated region
    $region2: #{_forward.1} parent=1 // pred_check
      _
    $region3: #{_forward.1} parent=1 // pred_check_branch
      %14 = sbr.rel (0) target = $region5
    $region4: #{_forward.1} parent=1 // pred_region
      _
    $region5: #{_forward.1} parent=1 // pred_fallthru
      _
    // Predicated region
    $region6: #{_forward.1} parent=1 // pred_check
      _
    $region7: #{_forward.1} parent=1 // pred_check_branch
      %16 = sbr.rel (0) target = $region9
    $region8: #{_forward.1} parent=1 // pred_region
      %s18 = ssub.s32 3072, 3072
      %19 = vsyncadd [#allocation3], %s18
      %s20 = sshll.u32 [#allocation2], 4
      %s21 = int_to_ptr.vmem [resolvable:$true] %s20
      %26 = dma.hbm_to_vmem [thread:$0]  %s1, 3072, %s21, [#allocation3], 192, 192, 12
    $region9: #{_forward.1} parent=1 // pred_fallthru
      _
    // Predicated region
    $region10: #{_forward.1} parent=1 // pred_check
      _
    $region11: #{_forward.1} parent=1 // pred_check_branch
      %28 = sbr.rel (0) target = $region13
    $region12: #{_forward.1} parent=1 // pred_region
      _
    $region13: #{_forward.1} parent=1 // pred_fallthru
      _
    // Predicated region
    $region14: #{_forward.1} parent=1 // pred_check
      _
    $region15: #{_forward.1} parent=1 // pred_check_branch
      %30 = sbr.rel (0) target = $region17
    $region16: #{_forward.1} parent=1 // pred_region
      _
    $region17: #{_forward.1} parent=1 // pred_fallthru
      _
    // Predicated region
    $region18: #{_forward.1} parent=1 // pred_check
      _
    $region19: #{_forward.1} parent=1 // pred_check_branch
      %32 = sbr.rel (0) target = $region21
    $region20: #{_forward.1} parent=1 // pred_region
      %s34 = ssub.s32 1024, 1024
      %35 = vsyncadd [#allocation5], %s34
      %s36 = sshll.u32 [#allocation4], 4
      %s37 = int_to_ptr.vmem [resolvable:$true] %s36
      %42 = dma.hbm_to_vmem [thread:$0]  %s4, 1024, %s37, [#allocation5], 64, 64, 4
    $region21: #{_forward.1} parent=1 // pred_fallthru
      _
    // Predicated region
    $region22: #{_forward.1} parent=1 // pred_check
      _
    $region23: #{_forward.1} parent=1 // pred_check_branch
      %44 = sbr.rel (0) target = $region25
    $region24: #{_forward.1} parent=1 // pred_region
      _
    $region25: #{_forward.1} parent=1 // pred_fallthru
      _
    // Predicated region
    $region26: #{_forward.1} parent=1 // pred_check
      _
    $region27: #{_forward.1} parent=1 // pred_check_branch
      %46 = sbr.rel (0) target = $region29
    $region28: #{_forward.1} parent=1 // pred_region
      %47 = dma.done [#allocation3], 3072
    $region29: #{_forward.1} parent=1 // pred_fallthru
      _
    // Predicated region
    $region30: #{_forward.1} parent=1 // pred_check
      _
    $region31: #{_forward.1} parent=1 // pred_check_branch
      %49 = sbr.rel (0) target = $region33
    $region32: #{_forward.1} parent=1 // pred_region
      %50 = dma.done [#allocation5], 1024
    $region33: #{_forward.1} parent=1 // pred_fallthru
      _
    %v52 = vld [vmem:[%s0] sm:$0xf]
    %v53 = vld [vmem:[#allocation2] sm:$0xff]
    %v54 = vld [vmem:[#allocation2 + $0x8] sm:$0xf]
    %v55 = vld [vmem:[#allocation2 + $0xc] sm:$0xff]
    %v56 = vld [vmem:[#allocation2 + $0x14] sm:$0xf]
    %v57 = vld [vmem:[#allocation2 + $0x18] sm:$0xff]
    %v58 = vld [vmem:[#allocation2 + $0x20] sm:$0xf]
    %v59 = vld [vmem:[#allocation2 + $0x24] sm:$0xff]
    %v60 = vld [vmem:[#allocation2 + $0x2c] sm:$0xf]
    %v61 = vld [vmem:[#allocation2 + $0x30] sm:$0xff]
    %v62 = vld [vmem:[#allocation2 + $0x38] sm:$0xf]
    %v63 = vld [vmem:[#allocation2 + $0x3c] sm:$0xff]
    %v64 = vld [vmem:[#allocation2 + $0x44] sm:$0xf]
    %v65 = vld [vmem:[#allocation2 + $0x48] sm:$0xff]
    %v66 = vld [vmem:[#allocation2 + $0x50] sm:$0xf]
    %v67 = vld [vmem:[#allocation2 + $0x54] sm:$0xff]
    %v68 = vld [vmem:[#allocation2 + $0x5c] sm:$0xf]
    %v69 = vld [vmem:[#allocation2 + $0x60] sm:$0xff]
    %v70 = vld [vmem:[#allocation2 + $0x68] sm:$0xf]
    %v71 = vld [vmem:[#allocation2 + $0x6c] sm:$0xff]
    %v72 = vld [vmem:[#allocation2 + $0x74] sm:$0xf]
    %v73 = vld [vmem:[#allocation2 + $0x78] sm:$0xff]
    %v74 = vld [vmem:[#allocation2 + $0x80] sm:$0xf]
    %v75 = vld [vmem:[#allocation2 + $0x84] sm:$0xff]
    %v76 = vld [vmem:[#allocation2 + $0x8c] sm:$0xf]
    %v77 = vld [vmem:[#allocation2 + $0x90] sm:$0xff]
    %v78 = vld [vmem:[#allocation2 + $0x98] sm:$0xf]
    %v79 = vld [vmem:[#allocation2 + $0x9c] sm:$0xff]
    %v80 = vld [vmem:[#allocation2 + $0xa4] sm:$0xf]
    %v81 = vld [vmem:[#allocation2 + $0xa8] sm:$0xff]
    %v82 = vld [vmem:[#allocation2 + $0xb0] sm:$0xf]
    %v83 = vld [vmem:[#allocation2 + $0xb4] sm:$0xff]
    %v84 = vld [vmem:[#allocation2 + $0xbc] sm:$0xf]
    %v85 = vld [vmem:[%s2] sm:$0x7]
    %v87 = vlaneseq
    %v88 = vshrl.u32 %v87, 7
    %v89 = vsub.s32 0, %v88
    %v90 = vrot.slane %v85, %v89
    %v91 = vlaneseq
    %v92 = vshrl.u32 %v91, 7
    %v93 = vsub.s32 1, %v92
    %v94 = vrot.slane %v85, %v93
    %v95 = vlaneseq
    %v96 = vshrl.u32 %v95, 7
    %v97 = vsub.s32 2, %v96
    %v98 = vrot.slane %v85, %v97
    %v134 = vunpack.c.l.b16 %v53
    %v135 = vunpack.c.h.b16 %v53
    %v136 = vunpack.c.l.b16 %v54
    %v137 = vunpack.c.l.b16 %v55
    %v138 = vunpack.c.h.b16 %v55
    %v139 = vunpack.c.l.b16 %v56
    %v140 = vunpack.c.l.b16 %v57
    %v141 = vunpack.c.h.b16 %v57
    %v142 = vunpack.c.l.b16 %v58
    %v143 = vunpack.c.l.b16 %v59
    %v144 = vunpack.c.h.b16 %v59
    %v145 = vunpack.c.l.b16 %v60
    %v146 = vunpack.c.l.b16 %v61
    %v147 = vunpack.c.h.b16 %v61
    %v148 = vunpack.c.l.b16 %v62
    %v149 = vunpack.c.l.b16 %v63
    %v150 = vunpack.c.h.b16 %v63
    %v151 = vunpack.c.l.b16 %v64
    %v152 = vunpack.c.l.b16 %v65
    %v153 = vunpack.c.h.b16 %v65
    %v154 = vunpack.c.l.b16 %v66
    %v155 = vunpack.c.l.b16 %v67
    %v156 = vunpack.c.h.b16 %v67
    %v157 = vunpack.c.l.b16 %v68
    %v158 = vunpack.c.l.b16 %v69
    %v159 = vunpack.c.h.b16 %v69
    %v160 = vunpack.c.l.b16 %v70
    %v161 = vunpack.c.l.b16 %v71
    %v162 = vunpack.c.h.b16 %v71
    %v163 = vunpack.c.l.b16 %v72
    %v164 = vunpack.c.l.b16 %v73
    %v165 = vunpack.c.h.b16 %v73
    %v166 = vunpack.c.l.b16 %v74
    %v167 = vunpack.c.l.b16 %v75
    %v168 = vunpack.c.h.b16 %v75
    %v169 = vunpack.c.l.b16 %v76
    %v170 = vunpack.c.l.b16 %v77
    %v171 = vunpack.c.h.b16 %v77
    %v172 = vunpack.c.l.b16 %v78
    %v173 = vunpack.c.l.b16 %v79
    %v174 = vunpack.c.h.b16 %v79
    %v175 = vunpack.c.l.b16 %v80
    %v176 = vunpack.c.l.b16 %v81
    %v177 = vunpack.c.h.b16 %v81
    %v178 = vunpack.c.l.b16 %v82
    %v179 = vunpack.c.l.b16 %v83
    %v180 = vunpack.c.h.b16 %v83
    %v181 = vunpack.c.l.b16 %v84
    %v182 = vpack.c.b16 %v137, %v134
    %v183 = vpack.c.b16 %v138, %v135
    %v184 = vpack.c.b16 %v139, %v136
    %v185 = vpack.c.b16 %v143, %v140
    %v186 = vpack.c.b16 %v144, %v141
    %v187 = vpack.c.b16 %v145, %v142
    %v188 = vpack.c.b16 %v149, %v146
    %v189 = vpack.c.b16 %v150, %v147
    %v190 = vpack.c.b16 %v151, %v148
    %v191 = vpack.c.b16 %v155, %v152
    %v192 = vpack.c.b16 %v156, %v153
    %v193 = vpack.c.b16 %v157, %v154
    %v194 = vpack.c.b16 %v161, %v158
    %v195 = vpack.c.b16 %v162, %v159
    %v196 = vpack.c.b16 %v163, %v160
    %v197 = vpack.c.b16 %v167, %v164
    %v198 = vpack.c.b16 %v168, %v165
    %v199 = vpack.c.b16 %v169, %v166
    %v200 = vpack.c.b16 %v173, %v170
    %v201 = vpack.c.b16 %v174, %v171
    %v202 = vpack.c.b16 %v175, %v172
    %v203 = vpack.c.b16 %v179, %v176
    %v204 = vpack.c.b16 %v180, %v177
    %v205 = vpack.c.b16 %v181, %v178
    %230 = vmatprep.subr.bf16.mxu0 %v183
    %231 = vmatpush1.bf16.msra.mxu0 %v182
    %232 = vmatprep.subr.bf16.mxu0 %v186
    %233 = vmatpush1.bf16.msra.mxu0 %v185
    %234 = vmatprep.subr.bf16.mxu0 %v189
    %235 = vmatpush1.bf16.msra.mxu0 %v188
    %236 = vmatprep.subr.bf16.mxu0 %v192
    %237 = vmatpush1.bf16.msra.mxu0 %v191
    %238 = vmatprep.subr.bf16.mxu0 %v195
    %239 = vmatpush1.bf16.msra.mxu0 %v194
    %240 = vmatprep.subr.bf16.mxu0 %v198
    %241 = vmatpush1.bf16.msra.mxu0 %v197
    %242 = vmatprep.subr.bf16.mxu0 %v201
    %243 = vmatpush1.bf16.msra.mxu0 %v200
    %244 = vmatprep.subr.bf16.mxu0 %v204
    %245 = vmatpush1.bf16.msra.mxu0 %v203
    %246 = vmatprep.subr.bf16.mxu0 0
    %247 = vmatpush1.bf16.msra.mxu0 0
    %248 = vmatprep.subr.bf16.mxu0 0
    %249 = vmatpush1.bf16.msra.mxu0 0
    %250 = vmatprep.subr.bf16.mxu0 0
    %251 = vmatpush1.bf16.msra.mxu0 0
    %252 = vmatprep.subr.bf16.mxu0 0
    %253 = vmatpush1.bf16.msra.mxu0 0
    %254 = vmatprep.subr.bf16.mxu0 0
    %255 = vmatpush1.bf16.msra.mxu0 0
    %256 = vmatprep.subr.bf16.mxu0 0
    %257 = vmatpush1.bf16.msra.mxu0 0
    %258 = vmatprep.subr.bf16.mxu0 0
    %259 = vmatpush1.bf16.msra.mxu0 0
    %260 = vmatprep.subr.bf16.mxu0 0
    %261 = vmatpush1.bf16.msra.mxu0 0
    %262 = vmatprep.mubr.bf16.mxu0 0
    %263 = vmatmul.mubr.bf16.gmra.mrb[0].mxu0 %v52
    %v264 = vpop.f32.mrb[0].mxu0
    %v265 = vadd.f32 %v90, %v264
    %v266 = vpop.f32.mrb[0].mxu0
    %v267 = vadd.f32 %v94, %v266
    %v268 = vpop.f32.mrb[0].mxu0
    %v269 = vpop.f32.mrb[0].mxu0
    %270 = vdwg.mxu0
    %271 = vmatprep.subr.bf16.mxu0 0
    %272 = vmatpush1.bf16.msra.mxu0 %v184
    %273 = vmatprep.subr.bf16.mxu0 0
    %274 = vmatpush1.bf16.msra.mxu0 %v187
    %275 = vmatprep.subr.bf16.mxu0 0
    %276 = vmatpush1.bf16.msra.mxu0 %v190
    %277 = vmatprep.subr.bf16.mxu0 0
    %278 = vmatpush1.bf16.msra.mxu0 %v193
    %279 = vmatprep.subr.bf16.mxu0 0
    %280 = vmatpush1.bf16.msra.mxu0 %v196
    %281 = vmatprep.subr.bf16.mxu0 0
    %282 = vmatpush1.bf16.msra.mxu0 %v199
    %283 = vmatprep.subr.bf16.mxu0 0
    %284 = vmatpush1.bf16.msra.mxu0 %v202
    %285 = vmatprep.subr.bf16.mxu0 0
    %286 = vmatpush1.bf16.msra.mxu0 %v205
    %287 = vmatprep.subr.bf16.mxu0 0
    %288 = vmatpush1.bf16.msra.mxu0 0
    %289 = vmatprep.subr.bf16.mxu0 0
    %290 = vmatpush1.bf16.msra.mxu0 0
    %291 = vmatprep.subr.bf16.mxu0 0
    %292 = vmatpush1.bf16.msra.mxu0 0
    %293 = vmatprep.subr.bf16.mxu0 0
    %294 = vmatpush1.bf16.msra.mxu0 0
    %295 = vmatprep.subr.bf16.mxu0 0
    %296 = vmatpush1.bf16.msra.mxu0 0
    %297 = vmatprep.subr.bf16.mxu0 0
    %298 = vmatpush1.bf16.msra.mxu0 0
    %299 = vmatprep.subr.bf16.mxu0 0
    %300 = vmatpush1.bf16.msra.mxu0 0
    %301 = vmatprep.subr.bf16.mxu0 0
    %302 = vmatpush1.bf16.msra.mxu0 0
    %303 = vmatprep.mubr.bf16.mxu0 0
    %304 = vmatmul.mubr.bf16.gmra.mrb[0].mxu0 %v52
    %v305 = vpop.f32.mrb[0].mxu0
    %v306 = vadd.f32 %v98, %v305
    %v307 = vpop.f32.mrb[0].mxu0
    %v308 = vpop.f32.mrb[0].mxu0
    %v309 = vpop.f32.mrb[0].mxu0
    %310 = vdwg.mxu0
    %311 = vxpose.xlu0.b32.start [1/16] %v265, 128
    %312 = vxpose.xlu0.b32.cont [2/16] 0.0, 128
    %313 = vxpose.xlu0.b32.cont [3/16] 0.0, 128
    %314 = vxpose.xlu0.b32.cont [4/16] 0.0, 128
    %315 = vxpose.xlu0.b32.cont [5/16] 0.0, 128
    %316 = vxpose.xlu0.b32.cont [6/16] 0.0, 128
    %317 = vxpose.xlu0.b32.cont [7/16] 0.0, 128
    %318 = vxpose.xlu0.b32.cont [8/16] 0.0, 128
    %319 = vxpose.xlu0.b32.cont [9/16] 0.0, 128
    %320 = vxpose.xlu0.b32.cont [10/16] 0.0, 128
    %321 = vxpose.xlu0.b32.cont [11/16] 0.0, 128
    %322 = vxpose.xlu0.b32.cont [12/16] 0.0, 128
    %323 = vxpose.xlu0.b32.cont [13/16] 0.0, 128
    %324 = vxpose.xlu0.b32.cont [14/16] 0.0, 128
    %325 = vxpose.xlu0.b32.cont [15/16] 0.0, 128
    %326 = vxpose.xlu0.b32.end [16/16] 0.0, 128
    %v327 = vpop.trf.xlu0
    %v328 = vpop.trf.xlu0
    %v329 = vpop.trf.xlu0
    %v330 = vpop.trf.xlu0
    %v331 = vpop.trf.xlu0
    %v332 = vpop.trf.xlu0
    %v333 = vpop.trf.xlu0
    %v334 = vpop.trf.xlu0
    %v335 = vpop.trf.xlu0
    %v336 = vpop.trf.xlu0
    %v337 = vpop.trf.xlu0
    %v338 = vpop.trf.xlu0
    %v339 = vpop.trf.xlu0
    %v340 = vpop.trf.xlu0
    %v341 = vpop.trf.xlu0
    %v342 = vpop.trf.xlu0
    %vm343 = vcmask 64512
    %v345 = vsel %vm343, %v327, 0
    %v348 = vsel %vm343, %v328, 0
    %v351 = vsel %vm343, %v329, 0
    %v354 = vsel %vm343, %v330, 0
    %v357 = vsel %vm343, %v331, 0
    %v360 = vsel %vm343, %v332, 0
    %v363 = vsel %vm343, %v333, 0
    %v366 = vsel %vm343, %v334, 0
    %v369 = vsel %vm343, %v335, 0
    %v372 = vsel %vm343, %v336, 0
    %v375 = vsel %vm343, %v337, 0
    %v378 = vsel %vm343, %v338, 0
    %v381 = vsel %vm343, %v339, 0
    %v384 = vsel %vm343, %v340, 0
    %v387 = vsel %vm343, %v341, 0
    %v390 = vsel %vm343, %v342, 0
    %392 = vmatprep.subr.mxu0 0.0
    %393 = vmatpush1.msra.mxu0 %v267
    %394 = vmatprep.subr.mxu0 0.0
    %395 = vmatpush1.msra.mxu0 0.0
    %396 = vmatprep.subr.mxu0 0.0
    %397 = vmatpush1.msra.mxu0 0.0
    %398 = vmatprep.subr.mxu0 0.0
    %399 = vmatpush1.msra.mxu0 0.0
    %400 = vmatprep.subr.mxu0 0.0
    %401 = vmatpush1.msra.mxu0 0.0
    %402 = vmatprep.subr.mxu0 0.0
    %403 = vmatpush1.msra.mxu0 0.0
    %404 = vmatprep.subr.mxu0 0.0
    %405 = vmatpush1.msra.mxu0 0.0
    %406 = vmatprep.subr.mxu0 0.0
    %407 = vmatpush1.msra.mxu0 0.0
    %408 = vmatprep.subr.mxu0 0.0
    %409 = vmatpush1.msra.mxu0 0.0
    %410 = vmatprep.subr.mxu0 0.0
    %411 = vmatpush1.msra.mxu0 0.0
    %412 = vmatprep.subr.mxu0 0.0
    %413 = vmatpush1.msra.mxu0 0.0
    %414 = vmatprep.subr.mxu0 0.0
    %415 = vmatpush1.msra.mxu0 0.0
    %416 = vmatprep.subr.mxu0 0.0
    %417 = vmatpush1.msra.mxu0 0.0
    %418 = vmatprep.subr.mxu0 0.0
    %419 = vmatpush1.msra.mxu0 0.0
    %420 = vmatprep.subr.mxu0 0.0
    %421 = vmatpush1.msra.mxu0 0.0
    %422 = vmatprep.subr.mxu0 0.0
    %423 = vmatpush1.msra.mxu0 0.0
    %424 = vmatprep.subr.mxu0 0.0
    %425 = vmatpush1.msra.mxu0 0.0
    %426 = vmatprep.subr.mxu0 0.0
    %427 = vmatpush1.msra.mxu0 0.0
    %428 = vmatprep.subr.mxu0 0.0
    %429 = vmatpush1.msra.mxu0 0.0
    %430 = vmatprep.subr.mxu0 0.0
    %431 = vmatpush1.msra.mxu0 0.0
    %432 = vmatprep.subr.mxu0 0.0
    %433 = vmatpush1.msra.mxu0 0.0
    %434 = vmatprep.subr.mxu0 0.0
    %435 = vmatpush1.msra.mxu0 0.0
    %436 = vmatprep.subr.mxu0 0.0
    %437 = vmatpush1.msra.mxu0 0.0
    %438 = vmatprep.subr.mxu0 0.0
    %439 = vmatpush1.msra.mxu0 0.0
    %440 = vmatprep.subr.mxu0 0.0
    %441 = vmatpush1.msra.mxu0 0.0
    %442 = vmatprep.subr.mxu0 0.0
    %443 = vmatpush1.msra.mxu0 0.0
    %444 = vmatprep.subr.mxu0 0.0
    %445 = vmatpush1.msra.mxu0 0.0
    %446 = vmatprep.subr.mxu0 0.0
    %447 = vmatpush1.msra.mxu0 0.0
    %448 = vmatprep.subr.mxu0 0.0
    %449 = vmatpush1.msra.mxu0 0.0
    %450 = vmatprep.subr.mxu0 0.0
    %451 = vmatpush1.msra.mxu0 0.0
    %452 = vmatprep.subr.mxu0 0.0
    %453 = vmatpush1.msra.mxu0 0.0
    %454 = vmatprep.subr.mxu0 0.0
    %455 = vmatpush1.msra.mxu0 0.0
    %456 = vmatprep.mubr.f32.mxu0 0.0
    %457 = vmatmul.mubr.f32.gmra.mrb[0].mxu0 %v345
    %v458 = vpop.f32.mrb[0].mxu0
    %v459 = vadd.f32 0.0, %v458
    %v460 = vpop.f32.mrb[0].mxu0
    %461 = vmatprep.mubr.f32.mxu0 0.0
    %462 = vmatmul.mubr.f32.gmra.mrb[0].mxu0 %v348
    %v463 = vpop.f32.mrb[0].mxu0
    %v464 = vadd.f32 0.0, %v463
    %v465 = vpop.f32.mrb[0].mxu0
    %466 = vmatprep.mubr.f32.mxu0 0.0
    %467 = vmatmul.mubr.f32.gmra.mrb[0].mxu0 %v351
    %v468 = vpop.f32.mrb[0].mxu0
    %v469 = vadd.f32 0.0, %v468
    %v470 = vpop.f32.mrb[0].mxu0
    %471 = vmatprep.mubr.f32.mxu0 0.0
    %472 = vmatmul.mubr.f32.gmra.mrb[0].mxu0 %v354
    %v473 = vpop.f32.mrb[0].mxu0
    %v474 = vadd.f32 0.0, %v473
    %v475 = vpop.f32.mrb[0].mxu0
    %476 = vmatprep.mubr.f32.mxu0 0.0
    %477 = vmatmul.mubr.f32.gmra.mrb[0].mxu0 %v357
    %v478 = vpop.f32.mrb[0].mxu0
    %v479 = vpop.f32.mrb[0].mxu0
    %480 = vmatprep.mubr.f32.mxu0 0.0
    %481 = vmatmul.mubr.f32.gmra.mrb[0].mxu0 %v360
    %v482 = vpop.f32.mrb[0].mxu0
    %v483 = vpop.f32.mrb[0].mxu0
    %484 = vmatprep.mubr.f32.mxu0 0.0
    %485 = vmatmul.mubr.f32.gmra.mrb[0].mxu0 %v363
    %v486 = vpop.f32.mrb[0].mxu0
    %v487 = vpop.f32.mrb[0].mxu0
    %488 = vmatprep.mubr.f32.mxu0 0.0
    %489 = vmatmul.mubr.f32.gmra.mrb[0].mxu0 %v366
    %v490 = vpop.f32.mrb[0].mxu0
    %v491 = vpop.f32.mrb[0].mxu0
    %492 = vmatprep.mubr.f32.mxu0 0.0
    %493 = vmatmul.mubr.f32.gmra.mrb[0].mxu0 %v369
    %v494 = vpop.f32.mrb[0].mxu0
    %v495 = vpop.f32.mrb[0].mxu0
    %496 = vmatprep.mubr.f32.mxu0 0.0
    %497 = vmatmul.mubr.f32.gmra.mrb[0].mxu0 %v372
    %v498 = vpop.f32.mrb[0].mxu0
    %v499 = vpop.f32.mrb[0].mxu0
    %500 = vmatprep.mubr.f32.mxu0 0.0
    %501 = vmatmul.mubr.f32.gmra.mrb[0].mxu0 %v375
    %v502 = vpop.f32.mrb[0].mxu0
    %v503 = vpop.f32.mrb[0].mxu0
    %504 = vmatprep.mubr.f32.mxu0 0.0
    %505 = vmatmul.mubr.f32.gmra.mrb[0].mxu0 %v378
    %v506 = vpop.f32.mrb[0].mxu0
    %v507 = vpop.f32.mrb[0].mxu0
    %508 = vmatprep.mubr.f32.mxu0 0.0
    %509 = vmatmul.mubr.f32.gmra.mrb[0].mxu0 %v381
    %v510 = vpop.f32.mrb[0].mxu0
    %v511 = vpop.f32.mrb[0].mxu0
    %512 = vmatprep.mubr.f32.mxu0 0.0
    %513 = vmatmul.mubr.f32.gmra.mrb[0].mxu0 %v384
    %v514 = vpop.f32.mrb[0].mxu0
    %v515 = vpop.f32.mrb[0].mxu0
    %516 = vmatprep.mubr.f32.mxu0 0.0
    %517 = vmatmul.mubr.f32.gmra.mrb[0].mxu0 %v387
    %v518 = vpop.f32.mrb[0].mxu0
    %v519 = vpop.f32.mrb[0].mxu0
    %520 = vmatprep.mubr.f32.mxu0 0.0
    %521 = vmatmul.mubr.f32.gmra.mrb[0].mxu0 %v390
    %v522 = vpop.f32.mrb[0].mxu0
    %v523 = vpop.f32.mrb[0].mxu0
    %524 = vdwg.mxu0
    %v525 = vmul.f32 %v459, 0.17677669
    %v526 = vmul.f32 %v464, 0.17677669
    %v527 = vmul.f32 %v469, 0.17677669
    %v528 = vmul.f32 %v474, 0.17677669
    %v529 = vld [vmem:[%s3] sm:$0x1]
    %v531 = vlaneseq
    %v532 = vshrl.u32 %v531, 7
    %v533 = vsub.s32 0, %v532
    %v534 = vrot.slane %v529, %v533
    %v536 = vadd.f32 %v525, %v534
    %v537 = vadd.f32 %v526, %v534
    %v538 = vadd.f32 %v527, %v534
    %v539 = vadd.f32 %v528, %v534
    %540 = vmax.xlane.f32.xlu0 %v536
    %v541 = vpop.xlane.xlu0 %540
    %542 = vmax.xlane.f32.xlu0 %v537
    %v543 = vpop.xlane.xlu0 %542
    %544 = vmax.xlane.f32.xlu0 %v538
    %v545 = vpop.xlane.xlu0 %544
    %546 = vmax.xlane.f32.xlu0 %v539
    %v547 = vpop.xlane.xlu0 %546
    %v548 = vsub.f32 %v536, %v541
    %v549 = vsub.f32 %v537, %v543
    %v550 = vsub.f32 %v538, %v545
    %v551 = vsub.f32 %v539, %v547
    %v552 = vmul.f32 %v548, 1.442695
    %v553 = vpow.pop %v552
    %v554 = vmul.f32 %v549, 1.442695
    %v555 = vpow.pop %v554
    %v556 = vmul.f32 %v550, 1.442695
    %v557 = vpow.pop %v556
    %v558 = vmul.f32 %v551, 1.442695
    %v559 = vpow.pop %v558
    %560 = vadd.xlane.f32.xlu0 %v553
    %v561 = vpop.xlane.xlu0 %560
    %562 = vadd.xlane.f32.xlu0 %v555
    %v563 = vpop.xlane.xlu0 %562
    %564 = vadd.xlane.f32.xlu0 %v557
    %v565 = vpop.xlane.xlu0 %564
    %566 = vadd.xlane.f32.xlu0 %v559
    %v567 = vpop.xlane.xlu0 %566
    %v568 = vrcp.pop %v561
    %v569 = vrcp.pop %v563
    %v570 = vrcp.pop %v565
    %v571 = vrcp.pop %v567
    %v572 = vmul.f32 %v553, %v568
    %v573 = vmul.f32 %v555, %v569
    %v574 = vmul.f32 %v557, %v570
    %v575 = vmul.f32 %v559, %v571
    %v576 = vpack.c.bf16 %v306, %v306
    %v577 = vpack.c.bf16 %v573, %v572
    %v578 = vpack.c.bf16 %v575, %v574
    %vm579 = vcmask 261120
    %v581 = vsel %vm579, %v576, 0
    %583 = vmatprep.subr.bf16.mxu0 0
    %584 = vmatpush1.bf16.msra.mxu0 %v577
    %585 = vmatprep.subr.bf16.mxu0 0
    %586 = vmatpush1.bf16.msra.mxu0 %v578
    %587 = vmatprep.subr.bf16.mxu0 0
    %588 = vmatpush1.bf16.msra.mxu0 0
    %589 = vmatprep.subr.bf16.mxu0 0
    %590 = vmatpush1.bf16.msra.mxu0 0
    %591 = vmatprep.subr.bf16.mxu0 0
    %592 = vmatpush1.bf16.msra.mxu0 0
    %593 = vmatprep.subr.bf16.mxu0 0
    %594 = vmatpush1.bf16.msra.mxu0 0
    %595 = vmatprep.subr.bf16.mxu0 0
    %596 = vmatpush1.bf16.msra.mxu0 0
    %597 = vmatprep.subr.bf16.mxu0 0
    %598 = vmatpush1.bf16.msra.mxu0 0
    %599 = vmatprep.subr.bf16.mxu0 0
    %600 = vmatpush1.bf16.msra.mxu0 0
    %601 = vmatprep.subr.bf16.mxu0 0
    %602 = vmatpush1.bf16.msra.mxu0 0
    %603 = vmatprep.subr.bf16.mxu0 0
    %604 = vmatpush1.bf16.msra.mxu0 0
    %605 = vmatprep.subr.bf16.mxu0 0
    %606 = vmatpush1.bf16.msra.mxu0 0
    %607 = vmatprep.subr.bf16.mxu0 0
    %608 = vmatpush1.bf16.msra.mxu0 0
    %609 = vmatprep.subr.bf16.mxu0 0
    %610 = vmatpush1.bf16.msra.mxu0 0
    %611 = vmatprep.subr.bf16.mxu0 0
    %612 = vmatpush1.bf16.msra.mxu0 0
    %613 = vmatprep.subr.bf16.mxu0 0
    %614 = vmatpush1.bf16.msra.mxu0 0
    %615 = vmatprep.mubr.bf16.mxu0 0
    %616 = vmatmul.mubr.bf16.gmra.mrb[0].mxu0 %v581
    %v617 = vpop.f32.mrb[0].mxu0
    %v618 = vadd.f32 0.0, %v617
    %v619 = vpop.f32.mrb[0].mxu0
    %v620 = vpop.f32.mrb[0].mxu0
    %v621 = vpop.f32.mrb[0].mxu0
    %622 = vdwg.mxu0
    %v623 = vpack.c.bf16 %v618, %v618
    %v624 = vld [vmem:[#allocation4] sm:$0xf]
    %v625 = vld [vmem:[#allocation4 + $0x4] sm:$0xf]
    %v626 = vld [vmem:[#allocation4 + $0x8] sm:$0xf]
    %v627 = vld [vmem:[#allocation4 + $0xc] sm:$0xf]
    %v628 = vld [vmem:[#allocation4 + $0x10] sm:$0xf]
    %v629 = vld [vmem:[#allocation4 + $0x14] sm:$0xf]
    %v630 = vld [vmem:[#allocation4 + $0x18] sm:$0xf]
    %v631 = vld [vmem:[#allocation4 + $0x1c] sm:$0xf]
    %v632 = vld [vmem:[#allocation4 + $0x20] sm:$0xf]
    %v633 = vld [vmem:[#allocation4 + $0x24] sm:$0xf]
    %v634 = vld [vmem:[#allocation4 + $0x28] sm:$0xf]
    %v635 = vld [vmem:[#allocation4 + $0x2c] sm:$0xf]
    %v636 = vld [vmem:[#allocation4 + $0x30] sm:$0xf]
    %v637 = vld [vmem:[#allocation4 + $0x34] sm:$0xf]
    %v638 = vld [vmem:[#allocation4 + $0x38] sm:$0xf]
    %v639 = vld [vmem:[#allocation4 + $0x3c] sm:$0xf]
    %v640 = vld [vmem:[%s5] sm:$0x1]
    %v642 = vlaneseq
    %v643 = vshrl.u32 %v642, 7
    %v644 = vsub.s32 0, %v643
    %v645 = vrot.slane %v640, %v644
    %v663 = vunpack.c.l.b16 %v624
    %v664 = vunpack.c.l.b16 %v625
    %v665 = vunpack.c.l.b16 %v626
    %v666 = vunpack.c.l.b16 %v627
    %v667 = vunpack.c.l.b16 %v628
    %v668 = vunpack.c.l.b16 %v629
    %v669 = vunpack.c.l.b16 %v630
    %v670 = vunpack.c.l.b16 %v631
    %v671 = vunpack.c.l.b16 %v632
    %v672 = vunpack.c.l.b16 %v633
    %v673 = vunpack.c.l.b16 %v634
    %v674 = vunpack.c.l.b16 %v635
    %v675 = vunpack.c.l.b16 %v636
    %v676 = vunpack.c.l.b16 %v637
    %v677 = vunpack.c.l.b16 %v638
    %v678 = vunpack.c.l.b16 %v639
    %v679 = vpack.c.b16 %v664, %v663
    %v680 = vpack.c.b16 %v666, %v665
    %v681 = vpack.c.b16 %v668, %v667
    %v682 = vpack.c.b16 %v670, %v669
    %v683 = vpack.c.b16 %v672, %v671
    %v684 = vpack.c.b16 %v674, %v673
    %v685 = vpack.c.b16 %v676, %v675
    %v686 = vpack.c.b16 %v678, %v677
    %695 = vmatprep.subr.bf16.mxu0 0
    %696 = vmatpush1.bf16.msra.mxu0 %v679
    %697 = vmatprep.subr.bf16.mxu0 0
    %698 = vmatpush1.bf16.msra.mxu0 %v680
    %699 = vmatprep.subr.bf16.mxu0 0
    %700 = vmatpush1.bf16.msra.mxu0 %v681
    %701 = vmatprep.subr.bf16.mxu0 0
    %702 = vmatpush1.bf16.msra.mxu0 %v682
    %703 = vmatprep.subr.bf16.mxu0 0
    %704 = vmatpush1.bf16.msra.mxu0 %v683
    %705 = vmatprep.subr.bf16.mxu0 0
    %706 = vmatpush1.bf16.msra.mxu0 %v684
    %707 = vmatprep.subr.bf16.mxu0 0
    %708 = vmatpush1.bf16.msra.mxu0 %v685
    %709 = vmatprep.subr.bf16.mxu0 0
    %710 = vmatpush1.bf16.msra.mxu0 %v686
    %711 = vmatprep.subr.bf16.mxu0 0
    %712 = vmatpush1.bf16.msra.mxu0 0
    %713 = vmatprep.subr.bf16.mxu0 0
    %714 = vmatpush1.bf16.msra.mxu0 0
    %715 = vmatprep.subr.bf16.mxu0 0
    %716 = vmatpush1.bf16.msra.mxu0 0
    %717 = vmatprep.subr.bf16.mxu0 0
    %718 = vmatpush1.bf16.msra.mxu0 0
    %719 = vmatprep.subr.bf16.mxu0 0
    %720 = vmatpush1.bf16.msra.mxu0 0
    %721 = vmatprep.subr.bf16.mxu0 0
    %722 = vmatpush1.bf16.msra.mxu0 0
    %723 = vmatprep.subr.bf16.mxu0 0
    %724 = vmatpush1.bf16.msra.mxu0 0
    %725 = vmatprep.subr.bf16.mxu0 0
    %726 = vmatpush1.bf16.msra.mxu0 0
    %727 = vmatprep.mubr.bf16.mxu0 0
    %728 = vmatmul.mubr.bf16.gmra.mrb[0].mxu0 %v623
    %v729 = vpop.f32.mrb[0].mxu0
    %v730 = vadd.f32 %v645, %v729
    %v731 = vpop.f32.mrb[0].mxu0
    %v732 = vpop.f32.mrb[0].mxu0
    %v733 = vpop.f32.mrb[0].mxu0
    %734 = vdwg.mxu0
    %735 = vmax.xlane.f32.xlu0 %v730
    %v736 = vpop.xlane.xlu0 %735
    %v737 = vsub.f32 %v730, %v736
    %v738 = vmul.f32 %v737, 1.442695
    %v739 = vpow.pop %v738
    %740 = vadd.xlane.f32.xlu0 %v739
    %v741 = vpop.xlane.xlu0 %740
    %v742 = vrcp.pop %v741
    %v743 = vmul.f32 %v739, %v742
    %744 = vst [vmem:[%s6] sm:$0xff] %v743
    // Predicated region
    $region34: #{_forward.1} parent=1 // pred_check
      _
    $region35: #{_forward.1} parent=1 // pred_check_branch
      %746 = sbr.rel (0) target = $region37
    $region36: #{_forward.1} parent=1 // pred_region
      _
    $region37: #{_forward.1} parent=1 // pred_fallthru
      _
    // Predicated region
    $region38: #{_forward.1} parent=1 // pred_check
      _
    $region39: #{_forward.1} parent=1 // pred_check_branch
      %748 = sbr.rel (0) target = $region41
    $region40: #{_forward.1} parent=1 // pred_region
      _
    $region41: #{_forward.1} parent=1 // pred_fallthru
      _
    %749 = vsyncpa [#allocation3], 1
    %750 = vsyncpa [#allocation5], 1

</llo_original>
